<compile_context>
chip_gen: v7x
topology: tpu7x:2x2x1
jax: 0.10.0
libtpu: 0.0.40
codegen_flags: <defaults>
</compile_context>

<pallas_src>
import functools

import jax
import jax.numpy as jnp
from jax.experimental import pallas as pl
from jax.experimental.pallas import tpu as pltpu

HIDDEN = 128
LANE = 128
MAX_TILE = 2048      # rows per grid step cap; ~5 MiB of per-tile VMEM at most


def _round_up(x, m):
    return (x + m - 1) // m * m


def _choose_tiles(batch):
    """Pick (tile_rows, padded_batch, num_tiles).

    - tile_rows is a multiple of 8 (sublane) and <= MAX_TILE.
    - num_tiles is an even count >= 2 whenever possible so the 'parallel'
      grid axis can shard across both TensorCores on v7x.
    - padding is minimized (no blanket round-up to a power of two)."""
    b8 = _round_up(batch, 8)
    if b8 < 16:                       # single 8-row tile; nothing to shard
        return b8, b8, 1
    n = max(2, pl.cdiv(b8, MAX_TILE))
    if n % 2:
        n += 1
    tb = _round_up(pl.cdiv(b8, n), 8)
    return tb, tb * n, n


def _mlp_padded(x_ref, w1_ref, b1_ref, w2_ref, b2_ref, w3_ref, b3_ref):
    """Shared 3-layer MLP body; returns f32 Q padded to LANE columns."""
    # In-kernel bf16 cast of the input (VPU pack) -> bf16 MXU, f32 accumulate.
    x = x_ref[...].astype(jnp.bfloat16)
    h1 = jnp.dot(x, w1_ref[...], preferred_element_type=jnp.float32)
    h1 = jnp.maximum(h1 + b1_ref[...], 0.0)

    h2 = jnp.dot(h1.astype(jnp.bfloat16), w2_ref[...],
                 preferred_element_type=jnp.float32)
    h2 = jnp.maximum(h2 + b2_ref[...], 0.0)

    q = jnp.dot(h2.astype(jnp.bfloat16), w3_ref[...],
                preferred_element_type=jnp.float32) + b3_ref[...]
    return q  # (TB, LANE) f32; columns >= actions are bias-only padding


def _greedy_action(q_pad, actions):
    """First index attaining the max over the real action columns
    (matches torch.max(1)[1] tie behavior). Padded columns masked out."""
    col = jax.lax.broadcasted_iota(jnp.int32, q_pad.shape, dimension=1)
    valid = col < actions
    q_m = jnp.where(valid, q_pad, -jnp.inf)
    q_max = jnp.max(q_m, axis=-1, keepdims=True)
    is_max = jnp.logical_and(q_m == q_max, valid)
    return jnp.min(jnp.where(is_max, col, q_pad.shape[-1]),
                   axis=-1, keepdims=True).astype(jnp.int32)


def deepq_kernel(x_ref, w1_ref, b1_ref, w2_ref, b2_ref, w3_ref, b3_ref,
                 q_ref, act_ref, *, actions):
    q = _mlp_padded(x_ref, w1_ref, b1_ref, w2_ref, b2_ref, w3_ref, b3_ref)
    # Compact Q store: only the real action columns go back to HBM.
    q_ref[...] = q[:, :actions].astype(q_ref.dtype)
    act_ref[...] = _greedy_action(q, actions)


def deepq_predict_kernel(x_ref, w1_ref, b1_ref, w2_ref, b2_ref, w3_ref, b3_ref,
                         act_ref, *, actions):
    q = _mlp_padded(x_ref, w1_ref, b1_ref, w2_ref, b2_ref, w3_ref, b3_ref)
    act_ref[...] = _greedy_action(q, actions)


def _const_spec(shape):
    # Constant index_map -> weight/bias stays VMEM-resident across grid steps.
    return pl.BlockSpec(shape, lambda i: (0, 0))


def _cost(B_pad, S, a_pad, out_bytes):
    w_bytes = 2 * (S * HIDDEN + HIDDEN * HIDDEN + HIDDEN * a_pad) \
        + 4 * (HIDDEN + HIDDEN + a_pad)
    return pl.CostEstimate(
        flops=2 * B_pad * (S * HIDDEN + HIDDEN * HIDDEN + HIDDEN * a_pad),
        transcendentals=0,
        bytes_accessed=B_pad * S * 4 + w_bytes + out_bytes)


@functools.partial(jax.jit, static_argnames=("actions",))
def deepq_forward(x, params, actions):
    """x: [B, state_shape] f32.  Returns (q [B, actions] f32,
    greedy_action [B, 1] int32).  Pad / slice fuse under jit."""
    B, S = x.shape
    a_pad = params["w3"].shape[1]
    TB, B_pad, n = _choose_tiles(B)
    if B_pad != B:
        x = jnp.pad(x, ((0, B_pad - B), (0, 0)))

    q, act = pl.pallas_call(
        functools.partial(deepq_kernel, actions=actions),
        out_shape=(
            jax.ShapeDtypeStruct((B_pad, actions), jnp.float32),
            jax.ShapeDtypeStruct((B_pad, 1), jnp.int32),
        ),
        grid=(n,),
        in_specs=[
            pl.BlockSpec((TB, S), lambda i: (i, 0)),   # x: tiled over batch
            _const_spec(params["w1"].shape),
            _const_spec(params["b1"].shape),
            _const_spec(params["w2"].shape),
            _const_spec(params["b2"].shape),
            _const_spec(params["w3"].shape),
            _const_spec(params["b3"].shape),
        ],
        out_specs=(
            pl.BlockSpec((TB, actions), lambda i: (i, 0)),  # compact Q block
            pl.BlockSpec((TB, 1), lambda i: (i, 0)),        # fused argmax
        ),
        compiler_params=pltpu.CompilerParams(
            dimension_semantics=("parallel",)),
        cost_estimate=_cost(B_pad, S, a_pad,
                            B_pad * actions * 4 + B_pad * 4),
    )(x, params["w1"], params["b1"], params["w2"], params["b2"],
      params["w3"], params["b3"])

    return q[:B], act[:B]


@functools.partial(jax.jit, static_argnames=("actions",))
def deepq_predict(state, params, actions):
    """torch DeepQ.predict equivalent: greedy action only (no Q writeback)."""
    B, S = state.shape
    a_pad = params["w3"].shape[1]
    TB, B_pad, n = _choose_tiles(B)
    if B_pad != B:
        state = jnp.pad(state, ((0, B_pad - B), (0, 0)))

    act = pl.pallas_call(
        functools.partial(deepq_predict_kernel, actions=actions),
        out_shape=jax.ShapeDtypeStruct((B_pad, 1), jnp.int32),
        grid=(n,),
        in_specs=[
            pl.BlockSpec((TB, S), lambda i: (i, 0)),
            _const_spec(params["w1"].shape),
            _const_spec(params["b1"].shape),
            _const_spec(params["w2"].shape),
            _const_spec(params["b2"].shape),
            _const_spec(params["w3"].shape),
            _const_spec(params["b3"].shape),
        ],
        out_specs=pl.BlockSpec((TB, 1), lambda i: (i, 0)),
        compiler_params=pltpu.CompilerParams(
            dimension_semantics=("parallel",)),
        cost_estimate=_cost(B_pad, S, a_pad, B_pad * 4),
    )(state, params["w1"], params["b1"], params["w2"], params["b2"],
      params["w3"], params["b3"])

    return act[:B]


def init_params(key, state_shape, actions, hidden=HIDDEN):
    """Mimics nn.Linear init: uniform(-1/sqrt(fan_in), 1/sqrt(fan_in)).
    Weights stored [in, out] bf16; biases [1, out] f32; layer-3 lane-padded
    with zeros (required so padded Q columns are excluded from argmax)."""
    def linear(key, fan_in, fan_out):
        kw, kb = jax.random.split(key)
        bound = 1.0 / jnp.sqrt(jnp.float32(fan_in))
        w = jax.random.uniform(kw, (fan_in, fan_out), jnp.float32, -bound, bound)
        b = jax.random.uniform(kb, (1, fan_out), jnp.float32, -bound, bound)
        return w, b

    k1, k2, k3 = jax.random.split(key, 3)
    w1, b1 = linear(k1, state_shape, hidden)
    w2, b2 = linear(k2, hidden, hidden)
    w3, b3 = linear(k3, hidden, actions)

    a_pad = _round_up(actions, LANE)
    w3p = jnp.zeros((hidden, a_pad), jnp.float32).at[:, :actions].set(w3)
    b3p = jnp.zeros((1, a_pad), jnp.float32).at[:, :actions].set(b3)

    return {
        "w1": w1.astype(jnp.bfloat16), "b1": b1,
        "w2": w2.astype(jnp.bfloat16), "b2": b2,
        "w3": w3p.astype(jnp.bfloat16), "b3": b3p,
    }


def deepq_reference(x, p, actions):
    """Plain-JAX reference mirroring the kernel's bf16-operand / f32-accumulate
    casting strategy (accepted precision change vs. the f32 PyTorch module)."""
    h1 = jnp.dot(x.astype(jnp.bfloat16), p["w1"],
                 preferred_element_type=jnp.float32) + p["b1"]
    h1 = jnp.maximum(h1, 0.0)
    h2 = jnp.dot(h1.astype(jnp.bfloat16), p["w2"],
                 preferred_element_type=jnp.float32) + p["b2"]
    h2 = jnp.maximum(h2, 0.0)
    q = jnp.dot(h2.astype(jnp.bfloat16), p["w3"],
                preferred_element_type=jnp.float32) + p["b3"]
    return q[:, :actions]


if __name__ == "__main__":
    key = jax.random.PRNGKey(0)
    k_params, k_x = jax.random.split(key)

    batch = 200          # -> two 104-row tiles (near-exact, even grid for v7x)
    state_shape = 32     # input feature dim
    actions = 4          # number of actions

    params = init_params(k_params, state_shape, actions)
    x = jax.random.normal(k_x, (batch, state_shape), jnp.float32)

    q, act = deepq_forward(x, params, actions)
    q, act = jax.block_until_ready((q, act))

    # Correctness: Q-values vs. bf16 plain-JAX reference.
    q_ref = deepq_reference(x, params, actions)
    assert q.shape == (batch, actions)
    assert jnp.allclose(q, q_ref, atol=1e-2, rtol=1e-2)

    # Correctness: fused greedy action must pick a (near-)maximal Q column.
    assert act.shape == (batch, 1)
    chosen = jnp.take_along_axis(q_ref, act, axis=1)
    assert bool(jnp.all(chosen >= q_ref.max(axis=1, keepdims=True) - 1e-2))

    # Equivalent of DeepQ.predict(state) for a single state: [1, 1] int action
    # via the predict-only kernel (no Q writeback at all).
    action0 = deepq_predict(x[:1], params, actions)
    action0 = jax.block_until_ready(action0)
    assert action0.shape == (1, 1)
    assert int(action0[0, 0]) == int(jnp.argmax(q_ref[0]))

    print("KERNEL_OK")
</pallas_src>

<mosaic_0001>
module attributes {stable_mosaic.version = 11 : i64} {
  func.func @deepq_kernel(%arg0: i32, %arg1: memref<104x32xf32, #tpu.memory_space<vmem>>, %arg2: memref<32x128xbf16, #tpu.memory_space<vmem>>, %arg3: memref<1x128xf32, #tpu.memory_space<vmem>>, %arg4: memref<128x128xbf16, #tpu.memory_space<vmem>>, %arg5: memref<1x128xf32, #tpu.memory_space<vmem>>, %arg6: memref<128x128xbf16, #tpu.memory_space<vmem>>, %arg7: memref<1x128xf32, #tpu.memory_space<vmem>>, %arg8: memref<104x4xf32, #tpu.memory_space<vmem>>, %arg9: memref<104x1xi32, #tpu.memory_space<vmem>>) attributes {dimension_semantics = [#tpu.dimension_semantics<parallel>], iteration_bounds = array<i64: 2>, scalar_prefetch = 0 : i64, scratch_operands = 0 : i64, tpu.core_type = #tpu.core_type<tc>, window_params = [{transform_indices = @transform_0, window_bounds = array<i64: 104, 32>}, {pipeline_mode = #tpu.pipeline_mode<synchronous>, transform_indices = @transform_1, window_bounds = array<i64: 32, 128>}, {pipeline_mode = #tpu.pipeline_mode<synchronous>, transform_indices = @transform_2, window_bounds = array<i64: 1, 128>}, {pipeline_mode = #tpu.pipeline_mode<synchronous>, transform_indices = @transform_3, window_bounds = array<i64: 128, 128>}, {pipeline_mode = #tpu.pipeline_mode<synchronous>, transform_indices = @transform_4, window_bounds = array<i64: 1, 128>}, {pipeline_mode = #tpu.pipeline_mode<synchronous>, transform_indices = @transform_5, window_bounds = array<i64: 128, 128>}, {pipeline_mode = #tpu.pipeline_mode<synchronous>, transform_indices = @transform_6, window_bounds = array<i64: 1, 128>}, {transform_indices = @transform_7, window_bounds = array<i64: 104, 4>}, {transform_indices = @transform_8, window_bounds = array<i64: 104, 1>}]} {
    %c0 = arith.constant 0 : index
    %c0_0 = arith.constant 0 : index
    %0 = vector.load %arg1[%c0, %c0_0] : memref<104x32xf32, #tpu.memory_space<vmem>>, vector<104x32xf32>
    %1 = arith.truncf %0 : vector<104x32xf32> to vector<104x32xbf16>
    %c0_1 = arith.constant 0 : index
    %c0_2 = arith.constant 0 : index
    %2 = vector.load %arg2[%c0_1, %c0_2] : memref<32x128xbf16, #tpu.memory_space<vmem>>, vector<32x128xbf16>
    %cst = arith.constant dense<0.000000e+00> : vector<104x128xf32>
    %3 = tpu.matmul %1, %2, %cst {dimension_numbers = #tpu.dot_dimension_numbers<[1], [0], [0], [1], [0, 0, 1, 1], [], []>} : vector<104x32xbf16>, vector<32x128xbf16>, vector<104x128xf32> -> vector<104x128xf32>
    %c0_3 = arith.constant 0 : index
    %c0_4 = arith.constant 0 : index
    %4 = vector.load %arg3[%c0_3, %c0_4] : memref<1x128xf32, #tpu.memory_space<vmem>>, vector<1x128xf32>
    %5 = vector.broadcast %4 : vector<1x128xf32> to vector<104x128xf32>
    %6 = arith.addf %3, %5 : vector<104x128xf32>
    %cst_5 = arith.constant 0.000000e+00 : f32
    %7 = vector.broadcast %cst_5 : f32 to vector<104x128xf32>
    %8 = arith.maximumf %6, %7 : vector<104x128xf32>
    %9 = arith.truncf %8 : vector<104x128xf32> to vector<104x128xbf16>
    %c0_6 = arith.constant 0 : index
    %c0_7 = arith.constant 0 : index
    %10 = vector.load %arg4[%c0_6, %c0_7] : memref<128x128xbf16, #tpu.memory_space<vmem>>, vector<128x128xbf16>
    %cst_8 = arith.constant dense<0.000000e+00> : vector<104x128xf32>
    %11 = tpu.matmul %9, %10, %cst_8 {dimension_numbers = #tpu.dot_dimension_numbers<[1], [0], [0], [1], [0, 0, 1, 1], [], []>} : vector<104x128xbf16>, vector<128x128xbf16>, vector<104x128xf32> -> vector<104x128xf32>
    %c0_9 = arith.constant 0 : index
    %c0_10 = arith.constant 0 : index
    %12 = vector.load %arg5[%c0_9, %c0_10] : memref<1x128xf32, #tpu.memory_space<vmem>>, vector<1x128xf32>
    %13 = vector.broadcast %12 : vector<1x128xf32> to vector<104x128xf32>
    %14 = arith.addf %11, %13 : vector<104x128xf32>
    %cst_11 = arith.constant 0.000000e+00 : f32
    %15 = vector.broadcast %cst_11 : f32 to vector<104x128xf32>
    %16 = arith.maximumf %14, %15 : vector<104x128xf32>
    %17 = arith.truncf %16 : vector<104x128xf32> to vector<104x128xbf16>
    %c0_12 = arith.constant 0 : index
    %c0_13 = arith.constant 0 : index
    %18 = vector.load %arg6[%c0_12, %c0_13] : memref<128x128xbf16, #tpu.memory_space<vmem>>, vector<128x128xbf16>
    %cst_14 = arith.constant dense<0.000000e+00> : vector<104x128xf32>
    %19 = tpu.matmul %17, %18, %cst_14 {dimension_numbers = #tpu.dot_dimension_numbers<[1], [0], [0], [1], [0, 0, 1, 1], [], []>} : vector<104x128xbf16>, vector<128x128xbf16>, vector<104x128xf32> -> vector<104x128xf32>
    %c0_15 = arith.constant 0 : index
    %c0_16 = arith.constant 0 : index
    %20 = vector.load %arg7[%c0_15, %c0_16] : memref<1x128xf32, #tpu.memory_space<vmem>>, vector<1x128xf32>
    %21 = vector.broadcast %20 : vector<1x128xf32> to vector<104x128xf32>
    %22 = arith.addf %19, %21 : vector<104x128xf32>
    %23 = vector.extract_strided_slice %22 {offsets = [0, 0], sizes = [104, 4], strides = [1, 1]} : vector<104x128xf32> to vector<104x4xf32>
    %c0_17 = arith.constant 0 : index
    %c0_18 = arith.constant 0 : index
    %24 = vector.load %arg8[%c0_17, %c0_18] : memref<104x4xf32, #tpu.memory_space<vmem>>, vector<104x4xf32>
    tpu.vector_store %arg8[%c0_17, %c0_18], %23 {strides = array<i32>} : memref<104x4xf32, #tpu.memory_space<vmem>>, vector<104x4xf32>,
    %25 = tpu.iota {dimensions = array<i32: 1>} : vector<104x128xi32>
    %c4_i32 = arith.constant 4 : i32
    %26 = vector.broadcast %c4_i32 : i32 to vector<104x128xi32>
    %27 = arith.cmpi slt, %25, %26 : vector<104x128xi32>
    %cst_19 = arith.constant 0xFF800000 : f32
    %28 = vector.broadcast %cst_19 : f32 to vector<104x128xf32>
    %29 = arith.select %27, %22, %28 : vector<104x128xi1>, vector<104x128xf32>
    %cst_20 = arith.constant dense<0xFF800000> : vector<104xf32>
    %30 = vector.multi_reduction <maximumf>, %29, %cst_20 [1] : vector<104x128xf32> to vector<104xf32>
    %31 = vector.shape_cast %30 : vector<104xf32> to vector<104x1xf32>
    %32 = vector.broadcast %31 : vector<104x1xf32> to vector<104x128xf32>
    %33 = arith.cmpf oeq, %29, %32 : vector<104x128xf32>
    %34 = arith.andi %33, %27 : vector<104x128xi1>
    %c128_i32 = arith.constant 128 : i32
    %35 = vector.broadcast %c128_i32 : i32 to vector<104x128xi32>
    %36 = arith.select %34, %25, %35 : vector<104x128xi1>, vector<104x128xi32>
    %cst_21 = arith.constant dense<2147483647> : vector<104xi32>
    %37 = vector.multi_reduction <minsi>, %36, %cst_21 [1] : vector<104x128xi32> to vector<104xi32>
    %38 = vector.shape_cast %37 : vector<104xi32> to vector<104x1xi32>
    %c0_22 = arith.constant 0 : index
    %c0_23 = arith.constant 0 : index
    %39 = vector.load %arg9[%c0_22, %c0_23] : memref<104x1xi32, #tpu.memory_space<vmem>>, vector<104x1xi32>
    tpu.vector_store %arg9[%c0_22, %c0_23], %38 {strides = array<i32>} : memref<104x1xi32, #tpu.memory_space<vmem>>, vector<104x1xi32>,
    return
  }
  func.func @transform_0(%arg0: i32) -> (i32, i32) {
    %c0_i32 = arith.constant 0 : i32
    %c0_i32_0 = arith.constant 0 : i32
    return %arg0, %c0_i32 : i32, i32
  }
  func.func @transform_1(%arg0: i32) -> (i32, i32) {
    %c0_i32 = arith.constant 0 : i32
    %c0_i32_0 = arith.constant 0 : i32
    %c0_i32_1 = arith.constant 0 : i32
    return %c0_i32, %c0_i32_0 : i32, i32
  }
  func.func @transform_2(%arg0: i32) -> (i32, i32) {
    %c0_i32 = arith.constant 0 : i32
    %c0_i32_0 = arith.constant 0 : i32
    %c0_i32_1 = arith.constant 0 : i32
    return %c0_i32, %c0_i32_0 : i32, i32
  }
  func.func @transform_3(%arg0: i32) -> (i32, i32) {
    %c0_i32 = arith.constant 0 : i32
    %c0_i32_0 = arith.constant 0 : i32
    %c0_i32_1 = arith.constant 0 : i32
    return %c0_i32, %c0_i32_0 : i32, i32
  }
  func.func @transform_4(%arg0: i32) -> (i32, i32) {
    %c0_i32 = arith.constant 0 : i32
    %c0_i32_0 = arith.constant 0 : i32
    %c0_i32_1 = arith.constant 0 : i32
    return %c0_i32, %c0_i32_0 : i32, i32
  }
  func.func @transform_5(%arg0: i32) -> (i32, i32) {
    %c0_i32 = arith.constant 0 : i32
    %c0_i32_0 = arith.constant 0 : i32
    %c0_i32_1 = arith.constant 0 : i32
    return %c0_i32, %c0_i32_0 : i32, i32
  }
  func.func @transform_6(%arg0: i32) -> (i32, i32) {
    %c0_i32 = arith.constant 0 : i32
    %c0_i32_0 = arith.constant 0 : i32
    %c0_i32_1 = arith.constant 0 : i32
    return %c0_i32, %c0_i32_0 : i32, i32
  }
  func.func @transform_7(%arg0: i32) -> (i32, i32) {
    %c0_i32 = arith.constant 0 : i32
    %c0_i32_0 = arith.constant 0 : i32
    return %arg0, %c0_i32 : i32, i32
  }
  func.func @transform_8(%arg0: i32) -> (i32, i32) {
    %c0_i32 = arith.constant 0 : i32
    %c0_i32_0 = arith.constant 0 : i32
    return %arg0, %c0_i32 : i32, i32
  }
}

</mosaic_0001>

<llo_original>
// kernel: deepq_forward.1
$region0: #{deepq_forward.1}
  #allocation0 [shape = 'u32[]', space=smem, size = 0x4, offset = 0x4, fixed_abs, tag = 'smem constant byte address 0x4 - core index']
  #allocation1 [shape = 'u32[144,128]{1,0:T(1,128)}', space=vmem, size = 0x12000, scoped, tag = 'internal scratch']
  %s0 = inlined_call_operand.vmem [shape: f32[208,32], index: 0, kind: input, shape index: {}]
  %s1 = inlined_call_operand.vmem [shape: bf16[32,128], index: 1, kind: input, shape index: {}]
  %s2 = inlined_call_operand.vmem [shape: f32[1,128], index: 2, kind: input, shape index: {}]
  %s3 = inlined_call_operand.vmem [shape: bf16[128,128], index: 3, kind: input, shape index: {}]
  %s4 = inlined_call_operand.vmem [shape: f32[1,128], index: 4, kind: input, shape index: {}]
  %s5 = inlined_call_operand.vmem [shape: bf16[128,128], index: 5, kind: input, shape index: {}]
  %s6 = inlined_call_operand.vmem [shape: f32[1,128], index: 6, kind: input, shape index: {}]
  %s7 = inlined_call_operand.vmem [shape: f32[208,4], index: 7, kind: output, shape index: {0}]
  %s8 = inlined_call_operand.vmem [shape: s32[208,1], index: 8, kind: output, shape index: {1}]
  %9 = xla_tuple %s7, %s8
  %s10 = sld [smem:[#allocation0]]
  $region69: #{deepq_forward.1} parent=0
    _
  %s12 = ssub.s32 1, %s10
  %s13 = scalar_select 0, %s12, %s10
  loop: start=0, step=1, limit=4
  $region2: #{deepq_forward.1} parent=0 // loop_pre_header
    _
  $region3: #{deepq_forward.1} parent=0 // loop_header
    %s15 = sphi 0, %s19
    %p16 = scmp.ge.s32.totalorder %s15, 4
    %s25 = sphi 0, %s27
    %s28 = sphi 0, %s25
    %s29 = sphi 0, %s28
    %s45 = sphi 0, %s29
    %s49 = sphi 0, %s49
    %s51 = sphi 0, %s49
    %s52 = sphi 0, %s51
    %s66 = sphi 0, %s52
    %s70 = sphi 0, %s70
    %s72 = sphi 0, %s70
    %s73 = sphi 0, %s72
    %s87 = sphi 0, %s73
    %s91 = sphi 0, %s91
    %s93 = sphi 0, %s91
    %s94 = sphi 0, %s93
    %s108 = sphi 0, %s94
    %s112 = sphi 0, %s112
    %s114 = sphi 0, %s112
    %s115 = sphi 0, %s114
    %s129 = sphi 0, %s115
    %s133 = sphi 0, %s133
    %s135 = sphi 0, %s133
    %s136 = sphi 0, %s135
    %s150 = sphi 0, %s136
    %s154 = sphi 0, %s154
    %s156 = sphi 0, %s154
    %s157 = sphi 0, %s156
    %s171 = sphi 0, %s157
    %s177 = sphi 0, %s179
    %s180 = sphi 0, %s177
    %s181 = sphi 0, %s180
    %s197 = sphi 0, %s181
    %s203 = sphi 0, %s205
    %s206 = sphi 0, %s203
    %s207 = sphi 0, %s206
    %s223 = sphi 0, %s207
  $region4: #{deepq_forward.1} parent=0 // loop_header_branch
    %18 = sbr.rel (%p16) target = $region8
  $region5: #{deepq_forward.1} parent=0 // loop_body
    %s20 = ssub.s32 %s15, 1
    %s21 = ssub.s32 %s15, 2
    %s22 = sadd.s32 %s15, 1
    %s23 = ssub.s32 %s15, %s22
    %p24 = scmp.eq.s32.totalorder %s23, 0
    %s26 = sadd.s32 %s25, 1
    %s27 = scalar_select %p24, %s25, %s26
    %p30 = pneg %p24
    %p31 = scmp.eq.s32.totalorder %s15, 1
    %p32 = por %p30, %p31
    %p33 = scmp.ne.s32.totalorder %s25, %s28
    %p34 = scmp.eq.s32.totalorder %s15, 0
    %p35 = por %p33, %p34
    %p36 = scmp.ne.s32.totalorder %s25, %s28
    %p37 = scmp.eq.s32.totalorder %s20, 1
    %p38 = por %p36, %p37
    %p39 = scmp.ne.s32.totalorder %s28, %s29
    %p40 = scmp.eq.s32.totalorder %s20, 0
    %p41 = por %p39, %p40
    %p42 = scmp.ne.s32.totalorder %s28, %s29
    %p43 = scmp.eq.s32.totalorder %s21, 1
    %p44 = por %p42, %p43
    %p46 = scmp.ne.s32.totalorder %s29, %s45
    %p47 = scmp.eq.s32.totalorder %s21, 0
    %p48 = por %p46, %p47
    %s50 = sadd.s32 %s49, 1
    %p53 = scmp.eq.s32.totalorder %s15, 1
    %p54 = scmp.ne.s32.totalorder %s49, %s51
    %p55 = scmp.eq.s32.totalorder %s15, 0
    %p56 = por %p54, %p55
    %p57 = scmp.ne.s32.totalorder %s49, %s51
    %p58 = scmp.eq.s32.totalorder %s20, 1
    %p59 = por %p57, %p58
    %p60 = scmp.ne.s32.totalorder %s51, %s52
    %p61 = scmp.eq.s32.totalorder %s20, 0
    %p62 = por %p60, %p61
    %p63 = scmp.ne.s32.totalorder %s51, %s52
    %p64 = scmp.eq.s32.totalorder %s21, 1
    %p65 = por %p63, %p64
    %p67 = scmp.ne.s32.totalorder %s52, %s66
    %p68 = scmp.eq.s32.totalorder %s21, 0
    %p69 = por %p67, %p68
    %s71 = sadd.s32 %s70, 1
    %p74 = scmp.eq.s32.totalorder %s15, 1
    %p75 = scmp.ne.s32.totalorder %s70, %s72
    %p76 = scmp.eq.s32.totalorder %s15, 0
    %p77 = por %p75, %p76
    %p78 = scmp.ne.s32.totalorder %s70, %s72
    %p79 = scmp.eq.s32.totalorder %s20, 1
    %p80 = por %p78, %p79
    %p81 = scmp.ne.s32.totalorder %s72, %s73
    %p82 = scmp.eq.s32.totalorder %s20, 0
    %p83 = por %p81, %p82
    %p84 = scmp.ne.s32.totalorder %s72, %s73
    %p85 = scmp.eq.s32.totalorder %s21, 1
    %p86 = por %p84, %p85
    %p88 = scmp.ne.s32.totalorder %s73, %s87
    %p89 = scmp.eq.s32.totalorder %s21, 0
    %p90 = por %p88, %p89
    %s92 = sadd.s32 %s91, 1
    %p95 = scmp.eq.s32.totalorder %s15, 1
    %p96 = scmp.ne.s32.totalorder %s91, %s93
    %p97 = scmp.eq.s32.totalorder %s15, 0
    %p98 = por %p96, %p97
    %p99 = scmp.ne.s32.totalorder %s91, %s93
    %p100 = scmp.eq.s32.totalorder %s20, 1
    %p101 = por %p99, %p100
    %p102 = scmp.ne.s32.totalorder %s93, %s94
    %p103 = scmp.eq.s32.totalorder %s20, 0
    %p104 = por %p102, %p103
    %p105 = scmp.ne.s32.totalorder %s93, %s94
    %p106 = scmp.eq.s32.totalorder %s21, 1
    %p107 = por %p105, %p106
    %p109 = scmp.ne.s32.totalorder %s94, %s108
    %p110 = scmp.eq.s32.totalorder %s21, 0
    %p111 = por %p109, %p110
    %s113 = sadd.s32 %s112, 1
    %p116 = scmp.eq.s32.totalorder %s15, 1
    %p117 = scmp.ne.s32.totalorder %s112, %s114
    %p118 = scmp.eq.s32.totalorder %s15, 0
    %p119 = por %p117, %p118
    %p120 = scmp.ne.s32.totalorder %s112, %s114
    %p121 = scmp.eq.s32.totalorder %s20, 1
    %p122 = por %p120, %p121
    %p123 = scmp.ne.s32.totalorder %s114, %s115
    %p124 = scmp.eq.s32.totalorder %s20, 0
    %p125 = por %p123, %p124
    %p126 = scmp.ne.s32.totalorder %s114, %s115
    %p127 = scmp.eq.s32.totalorder %s21, 1
    %p128 = por %p126, %p127
    %p130 = scmp.ne.s32.totalorder %s115, %s129
    %p131 = scmp.eq.s32.totalorder %s21, 0
    %p132 = por %p130, %p131
    %s134 = sadd.s32 %s133, 1
    %p137 = scmp.eq.s32.totalorder %s15, 1
    %p138 = scmp.ne.s32.totalorder %s133, %s135
    %p139 = scmp.eq.s32.totalorder %s15, 0
    %p140 = por %p138, %p139
    %p141 = scmp.ne.s32.totalorder %s133, %s135
    %p142 = scmp.eq.s32.totalorder %s20, 1
    %p143 = por %p141, %p142
    %p144 = scmp.ne.s32.totalorder %s135, %s136
    %p145 = scmp.eq.s32.totalorder %s20, 0
    %p146 = por %p144, %p145
    %p147 = scmp.ne.s32.totalorder %s135, %s136
    %p148 = scmp.eq.s32.totalorder %s21, 1
    %p149 = por %p147, %p148
    %p151 = scmp.ne.s32.totalorder %s136, %s150
    %p152 = scmp.eq.s32.totalorder %s21, 0
    %p153 = por %p151, %p152
    %s155 = sadd.s32 %s154, 1
    %p158 = scmp.eq.s32.totalorder %s15, 1
    %p159 = scmp.ne.s32.totalorder %s154, %s156
    %p160 = scmp.eq.s32.totalorder %s15, 0
    %p161 = por %p159, %p160
    %p162 = scmp.ne.s32.totalorder %s154, %s156
    %p163 = scmp.eq.s32.totalorder %s20, 1
    %p164 = por %p162, %p163
    %p165 = scmp.ne.s32.totalorder %s156, %s157
    %p166 = scmp.eq.s32.totalorder %s20, 0
    %p167 = por %p165, %p166
    %p168 = scmp.ne.s32.totalorder %s156, %s157
    %p169 = scmp.eq.s32.totalorder %s21, 1
    %p170 = por %p168, %p169
    %p172 = scmp.ne.s32.totalorder %s157, %s171
    %p173 = scmp.eq.s32.totalorder %s21, 0
    %p174 = por %p172, %p173
    %s175 = ssub.s32 %s15, %s22
    %p176 = scmp.eq.s32.totalorder %s175, 0
    %s178 = sadd.s32 %s177, 1
    %s179 = scalar_select %p176, %s177, %s178
    %p182 = pneg %p176
    %p183 = scmp.eq.s32.totalorder %s15, 1
    %p184 = por %p182, %p183
    %p185 = scmp.ne.s32.totalorder %s177, %s180
    %p186 = scmp.eq.s32.totalorder %s15, 0
    %p187 = por %p185, %p186
    %p188 = scmp.ne.s32.totalorder %s177, %s180
    %p189 = scmp.eq.s32.totalorder %s20, 1
    %p190 = por %p188, %p189
    %p191 = scmp.ne.s32.totalorder %s180, %s181
    %p192 = scmp.eq.s32.totalorder %s20, 0
    %p193 = por %p191, %p192
    %p194 = scmp.ne.s32.totalorder %s180, %s181
    %p195 = scmp.eq.s32.totalorder %s21, 1
    %p196 = por %p194, %p195
    %p198 = scmp.ne.s32.totalorder %s181, %s197
    %p199 = scmp.eq.s32.totalorder %s21, 0
    %p200 = por %p198, %p199
    %s201 = ssub.s32 %s15, %s22
    %p202 = scmp.eq.s32.totalorder %s201, 0
    %s204 = sadd.s32 %s203, 1
    %s205 = scalar_select %p202, %s203, %s204
    %p208 = pneg %p202
    %p209 = scmp.eq.s32.totalorder %s15, 1
    %p210 = por %p208, %p209
    %p211 = scmp.ne.s32.totalorder %s203, %s206
    %p212 = scmp.eq.s32.totalorder %s15, 0
    %p213 = por %p211, %p212
    %p214 = scmp.ne.s32.totalorder %s203, %s206
    %p215 = scmp.eq.s32.totalorder %s20, 1
    %p216 = por %p214, %p215
    %p217 = scmp.ne.s32.totalorder %s206, %s207
    %p218 = scmp.eq.s32.totalorder %s20, 0
    %p219 = por %p217, %p218
    %p220 = scmp.ne.s32.totalorder %s206, %s207
    %p221 = scmp.eq.s32.totalorder %s21, 1
    %p222 = por %p220, %p221
    %p224 = scmp.ne.s32.totalorder %s207, %s223
    %p225 = scmp.eq.s32.totalorder %s21, 0
    %p226 = por %p224, %p225
    %p227 = scmp.le.s32.totalorder 1, %s15
    %p228 = scmp.lt.s32.totalorder %s15, 3
    %p229 = pnand %p227, %p228
    %p230 = pneg %p229
    // Predicated region
    $region9: #{deepq_forward.1} parent=5 // pred_check
      _
    $region10: #{deepq_forward.1} parent=5 // pred_check_branch
      %232 = sbr.rel (%p229) target = $region12
    $region11: #{deepq_forward.1} parent=5 // pred_region
      %s233 = ssub.s32 %s15, 1
      // Predicated region
      $region13: #{deepq_forward.1} parent=11 // pred_check
        %p234 = pneg %p62
      $region14: #{deepq_forward.1} parent=11 // pred_check_branch
        %236 = sbr.rel (%p234) target = $region16
      $region15: #{deepq_forward.1} parent=11 // pred_region
        _
      $region16: #{deepq_forward.1} parent=11 // pred_fallthru
        _
      // Predicated region
      $region17: #{deepq_forward.1} parent=11 // pred_check
        %p237 = pneg %p83
      $region18: #{deepq_forward.1} parent=11 // pred_check_branch
        %239 = sbr.rel (%p237) target = $region20
      $region19: #{deepq_forward.1} parent=11 // pred_region
        _
      $region20: #{deepq_forward.1} parent=11 // pred_fallthru
        _
      // Predicated region
      $region21: #{deepq_forward.1} parent=11 // pred_check
        %p240 = pneg %p104
      $region22: #{deepq_forward.1} parent=11 // pred_check_branch
        %242 = sbr.rel (%p240) target = $region24
      $region23: #{deepq_forward.1} parent=11 // pred_region
        _
      $region24: #{deepq_forward.1} parent=11 // pred_fallthru
        _
      // Predicated region
      $region25: #{deepq_forward.1} parent=11 // pred_check
        %p243 = pneg %p125
      $region26: #{deepq_forward.1} parent=11 // pred_check_branch
        %245 = sbr.rel (%p243) target = $region28
      $region27: #{deepq_forward.1} parent=11 // pred_region
        _
      $region28: #{deepq_forward.1} parent=11 // pred_fallthru
        _
      // Predicated region
      $region29: #{deepq_forward.1} parent=11 // pred_check
        %p246 = pneg %p146
      $region30: #{deepq_forward.1} parent=11 // pred_check_branch
        %248 = sbr.rel (%p246) target = $region32
      $region31: #{deepq_forward.1} parent=11 // pred_region
        _
      $region32: #{deepq_forward.1} parent=11 // pred_fallthru
        _
      // Predicated region
      $region33: #{deepq_forward.1} parent=11 // pred_check
        %p249 = pneg %p167
      $region34: #{deepq_forward.1} parent=11 // pred_check_branch
        %251 = sbr.rel (%p249) target = $region36
      $region35: #{deepq_forward.1} parent=11 // pred_region
        _
      $region36: #{deepq_forward.1} parent=11 // pred_fallthru
        _
    $region12: #{deepq_forward.1} parent=5 // pred_fallthru
      _
    %p252 = scmp.lt.s32.totalorder %s15, 2
    // Predicated region
    $region37: #{deepq_forward.1} parent=5 // pred_check
      %p253 = pneg %p252
    $region38: #{deepq_forward.1} parent=5 // pred_check_branch
      %255 = sbr.rel (%p253) target = $region40
    $region39: #{deepq_forward.1} parent=5 // pred_region
      // Predicated region
      $region41: #{deepq_forward.1} parent=39 // pred_check
        %p256 = pneg %p35
      $region42: #{deepq_forward.1} parent=39 // pred_check_branch
        %258 = sbr.rel (%p256) target = $region44
      $region43: #{deepq_forward.1} parent=39 // pred_region
        %s259 = smul.u32 13, %s15
        %p260 = scmp.lt.s32.totalorder %s259, 25
        %s261 = scalar_select %p260, %s259, 25
        %s262 = smul.addr %s261, 8
        %s263 = scalar_lea.vmem %s0, %s262
        %s264 = smul.u32 13, %s15
      $region44: #{deepq_forward.1} parent=39 // pred_fallthru
        _
    $region40: #{deepq_forward.1} parent=5 // pred_fallthru
      _
    %p265 = scmp.le.s32.totalorder 1, %s15
    %p266 = scmp.lt.s32.totalorder %s15, 3
    %p267 = pnand %p265, %p266
    %p268 = pneg %p267
    // Predicated region
    $region45: #{deepq_forward.1} parent=5 // pred_check
      _
    $region46: #{deepq_forward.1} parent=5 // pred_check_branch
      %270 = sbr.rel (%p267) target = $region48
    $region47: #{deepq_forward.1} parent=5 // pred_region
      %s271 = ssub.s32 %s15, 1
      %s272 = smul.u32 13, %s20
      %p273 = scmp.lt.s32.totalorder %s272, 25
      %s274 = scalar_select %p273, %s272, 25
      %s275 = smul.addr %s274, 8
      %s276 = scalar_lea.vmem %s0, %s275
      %p277 = pneg %p41
      %p278 = pneg %p38
      %p279 = pneg %p62
      %p280 = pneg %p59
      %p281 = pneg %p83
      %p282 = pneg %p80
      %p283 = pneg %p104
      %p284 = pneg %p101
      %p285 = pneg %p125
      %p286 = pneg %p122
      %p287 = pneg %p146
      %p288 = pneg %p143
      %p289 = pneg %p167
      %p290 = pneg %p164
      %p291 = pneg %p193
      %p292 = pneg %p190
      %s293 = smul.u32 13, %s20
      %p294 = scmp.lt.s32.totalorder %s293, 25
      %s295 = scalar_select %p294, %s293, 25
      %s296 = smul.addr %s295, 8
      %s297 = scalar_lea.vmem %s7, %s296
      %p298 = pneg %p219
      %p299 = pneg %p216
      %s300 = smul.u32 13, %s20
      %p301 = scmp.lt.s32.totalorder %s300, 25
      %s302 = scalar_select %p301, %s300, 25
      %s303 = smul.addr %s302, 8
      %s304 = scalar_lea.vmem %s8, %s303
      %s305 = smul.u32 13, %s20
      %p306 = scmp.lt.s32.totalorder %s305, 25
      %s307 = scalar_select %p306, %s305, 25
      %s308 = smul.addr %s307, 8
      %s309 = scalar_lea.vmem %s0, %s308
      %s310 = smul.u32 13, %s20
      %s311 = smul.u32 13, %s20
      %p312 = scmp.lt.s32.totalorder %s311, 25
      %s313 = scalar_select %p312, %s311, 25
      %s314 = smul.addr %s313, 8
      %s315 = scalar_lea.vmem %s7, %s314
      %s316 = smul.u32 13, %s20
      %s317 = smul.u32 13, %s20
      %p318 = scmp.lt.s32.totalorder %s317, 25
      %s319 = scalar_select %p318, %s317, 25
      %s320 = smul.addr %s319, 8
      %s321 = scalar_lea.vmem %s8, %s320
      %s322 = smul.u32 13, %s20
      %v324 = vld [vmem:[%s309] sm:$0xff]
      %v325 = vld [vmem:[%s309 + $0x8] sm:$0xff]
      %v326 = vld [vmem:[%s309 + $0x10] sm:$0xff]
      %v327 = vld [vmem:[%s309 + $0x18] sm:$0xff]
      %v328 = vld [vmem:[%s309 + $0x20] sm:$0xff]
      %v329 = vld [vmem:[%s309 + $0x28] sm:$0xff]
      %v330 = vld [vmem:[%s309 + $0x30] sm:$0xff]
      %v331 = vld [vmem:[%s309 + $0x38] sm:$0xff]
      %v332 = vld [vmem:[%s309 + $0x40] sm:$0xff]
      %v333 = vld [vmem:[%s309 + $0x48] sm:$0xff]
      %v334 = vld [vmem:[%s309 + $0x50] sm:$0xff]
      %v335 = vld [vmem:[%s309 + $0x58] sm:$0xff]
      %v336 = vld [vmem:[%s309 + $0x60] sm:$0xff]
      %v337 = vpack.c.bf16 %v325, %v324
      %v338 = vpack.c.bf16 %v327, %v326
      %v339 = vpack.c.bf16 %v329, %v328
      %v340 = vpack.c.bf16 %v331, %v330
      %v341 = vpack.c.bf16 %v333, %v332
      %v342 = vpack.c.bf16 %v335, %v334
      %v343 = vpack.c.bf16 %v336, %v336
      %v344 = vld [vmem:[%s1] sm:$0xf]
      %v345 = vld [vmem:[%s1 + $0x4] sm:$0xf]
      %v346 = vld [vmem:[%s1 + $0x8] sm:$0xf]
      %v347 = vld [vmem:[%s1 + $0xc] sm:$0xf]
      %v348 = vld [vmem:[%s2] sm:$0x1]
      %v350 = vlaneseq
      %v351 = vshrl.u32 %v350, 7
      %v352 = vsub.s32 0, %v351
      %v353 = vrot.slane %v348, %v352
      %v359 = vunpack.c.l.b16 %v344
      %v360 = vunpack.c.l.b16 %v345
      %v361 = vunpack.c.l.b16 %v346
      %v362 = vunpack.c.l.b16 %v347
      %v363 = vpack.c.b16 %v360, %v359
      %v364 = vpack.c.b16 %v362, %v361
      %vm367 = vcmask 261120
      %v369 = vsel %vm367, %v337, 0
      %v372 = vsel %vm367, %v338, 0
      %v375 = vsel %vm367, %v339, 0
      %v378 = vsel %vm367, %v340, 0
      %v381 = vsel %vm367, %v341, 0
      %v384 = vsel %vm367, %v342, 0
      %v387 = vsel %vm367, %v343, 0
      %389 = vmatprep.subr.bf16.mxu0 0
      %390 = vmatpush1.bf16.msra.mxu0 %v363
      %391 = vmatprep.subr.bf16.mxu0 0
      %392 = vmatpush1.bf16.msra.mxu0 %v364
      %393 = vmatprep.subr.bf16.mxu0 0
      %394 = vmatpush1.bf16.msra.mxu0 0
      %395 = vmatprep.subr.bf16.mxu0 0
      %396 = vmatpush1.bf16.msra.mxu0 0
      %397 = vmatprep.subr.bf16.mxu0 0
      %398 = vmatpush1.bf16.msra.mxu0 0
      %399 = vmatprep.subr.bf16.mxu0 0
      %400 = vmatpush1.bf16.msra.mxu0 0
      %401 = vmatprep.subr.bf16.mxu0 0
      %402 = vmatpush1.bf16.msra.mxu0 0
      %403 = vmatprep.subr.bf16.mxu0 0
      %404 = vmatpush1.bf16.msra.mxu0 0
      %405 = vmatprep.subr.bf16.mxu0 0
      %406 = vmatpush1.bf16.msra.mxu0 0
      %407 = vmatprep.subr.bf16.mxu0 0
      %408 = vmatpush1.bf16.msra.mxu0 0
      %409 = vmatprep.subr.bf16.mxu0 0
      %410 = vmatpush1.bf16.msra.mxu0 0
      %411 = vmatprep.subr.bf16.mxu0 0
      %412 = vmatpush1.bf16.msra.mxu0 0
      %413 = vmatprep.subr.bf16.mxu0 0
      %414 = vmatpush1.bf16.msra.mxu0 0
      %415 = vmatprep.subr.bf16.mxu0 0
      %416 = vmatpush1.bf16.msra.mxu0 0
      %417 = vmatprep.subr.bf16.mxu0 0
      %418 = vmatpush1.bf16.msra.mxu0 0
      %419 = vmatprep.subr.bf16.mxu0 0
      %420 = vmatpush1.bf16.msra.mxu0 0
      %421 = vmatprep.mubr.bf16.mxu0 0
      %422 = vmatmul.mubr.bf16.gmra.mrb[0].mxu0 %v369
      %v423 = vpop.f32.mrb[0].mxu0
      %v424 = vadd.f32 %v353, %v423
      %v425 = vpop.f32.mrb[0].mxu0
      %v426 = vpop.f32.mrb[0].mxu0
      %v427 = vadd.f32 %v353, %v426
      %v428 = vpop.f32.mrb[0].mxu0
      %429 = vmatprep.mubr.bf16.mxu0 0
      %430 = vmatmul.mubr.bf16.gmra.mrb[0].mxu0 %v372
      %v431 = vpop.f32.mrb[0].mxu0
      %v432 = vadd.f32 %v353, %v431
      %v433 = vpop.f32.mrb[0].mxu0
      %v434 = vpop.f32.mrb[0].mxu0
      %v435 = vadd.f32 %v353, %v434
      %v436 = vpop.f32.mrb[0].mxu0
      %437 = vmatprep.mubr.bf16.mxu0 0
      %438 = vmatmul.mubr.bf16.gmra.mrb[0].mxu0 %v375
      %v439 = vpop.f32.mrb[0].mxu0
      %v440 = vadd.f32 %v353, %v439
      %v441 = vpop.f32.mrb[0].mxu0
      %v442 = vpop.f32.mrb[0].mxu0
      %v443 = vadd.f32 %v353, %v442
      %v444 = vpop.f32.mrb[0].mxu0
      %445 = vmatprep.mubr.bf16.mxu0 0
      %446 = vmatmul.mubr.bf16.gmra.mrb[0].mxu0 %v378
      %v447 = vpop.f32.mrb[0].mxu0
      %v448 = vadd.f32 %v353, %v447
      %v449 = vpop.f32.mrb[0].mxu0
      %v450 = vpop.f32.mrb[0].mxu0
      %v451 = vadd.f32 %v353, %v450
      %v452 = vpop.f32.mrb[0].mxu0
      %453 = vmatprep.mubr.bf16.mxu0 0
      %454 = vmatmul.mubr.bf16.gmra.mrb[0].mxu0 %v381
      %v455 = vpop.f32.mrb[0].mxu0
      %v456 = vadd.f32 %v353, %v455
      %v457 = vpop.f32.mrb[0].mxu0
      %v458 = vpop.f32.mrb[0].mxu0
      %v459 = vadd.f32 %v353, %v458
      %v460 = vpop.f32.mrb[0].mxu0
      %461 = vmatprep.mubr.bf16.mxu0 0
      %462 = vmatmul.mubr.bf16.gmra.mrb[0].mxu0 %v384
      %v463 = vpop.f32.mrb[0].mxu0
      %v464 = vadd.f32 %v353, %v463
      %v465 = vpop.f32.mrb[0].mxu0
      %v466 = vpop.f32.mrb[0].mxu0
      %v467 = vadd.f32 %v353, %v466
      %v468 = vpop.f32.mrb[0].mxu0
      %469 = vmatprep.mubr.bf16.mxu0 0
      %470 = vmatmul.mubr.bf16.gmra.mrb[0].mxu0 %v387
      %v471 = vpop.f32.mrb[0].mxu0
      %v472 = vadd.f32 %v353, %v471
      %v473 = vpop.f32.mrb[0].mxu0
      %v474 = vpop.f32.mrb[0].mxu0
      %v475 = vpop.f32.mrb[0].mxu0
      %476 = vdwg.mxu0
      %v477 = vmax.f32 %v424, 0.0
      %v478 = vmax.f32 %v427, 0.0
      %v479 = vmax.f32 %v432, 0.0
      %v480 = vmax.f32 %v435, 0.0
      %v481 = vmax.f32 %v440, 0.0
      %v482 = vmax.f32 %v443, 0.0
      %v483 = vmax.f32 %v448, 0.0
      %v484 = vmax.f32 %v451, 0.0
      %v485 = vmax.f32 %v456, 0.0
      %v486 = vmax.f32 %v459, 0.0
      %v487 = vmax.f32 %v464, 0.0
      %v488 = vmax.f32 %v467, 0.0
      %v489 = vmax.f32 %v472, 0.0
      %v490 = vpack.c.bf16 %v478, %v477
      %v491 = vpack.c.bf16 %v480, %v479
      %v492 = vpack.c.bf16 %v482, %v481
      %v493 = vpack.c.bf16 %v484, %v483
      %v494 = vpack.c.bf16 %v486, %v485
      %v495 = vpack.c.bf16 %v488, %v487
      %v496 = vpack.c.bf16 %v489, %v489
      %v497 = vld [vmem:[%s3] sm:$0xf]
      %v498 = vld [vmem:[%s3 + $0x4] sm:$0xf]
      %v499 = vld [vmem:[%s3 + $0x8] sm:$0xf]
      %v500 = vld [vmem:[%s3 + $0xc] sm:$0xf]
      %v501 = vld [vmem:[%s3 + $0x10] sm:$0xf]
      %v502 = vld [vmem:[%s3 + $0x14] sm:$0xf]
      %v503 = vld [vmem:[%s3 + $0x18] sm:$0xf]
      %v504 = vld [vmem:[%s3 + $0x1c] sm:$0xf]
      %v505 = vld [vmem:[%s3 + $0x20] sm:$0xf]
      %v506 = vld [vmem:[%s3 + $0x24] sm:$0xf]
      %v507 = vld [vmem:[%s3 + $0x28] sm:$0xf]
      %v508 = vld [vmem:[%s3 + $0x2c] sm:$0xf]
      %v509 = vld [vmem:[%s3 + $0x30] sm:$0xf]
      %v510 = vld [vmem:[%s3 + $0x34] sm:$0xf]
      %v511 = vld [vmem:[%s3 + $0x38] sm:$0xf]
      %v512 = vld [vmem:[%s3 + $0x3c] sm:$0xf]
      %v513 = vld [vmem:[%s4] sm:$0x1]
      %v515 = vlaneseq
      %v516 = vshrl.u32 %v515, 7
      %v517 = vsub.s32 0, %v516
      %v518 = vrot.slane %v513, %v517
      %v536 = vunpack.c.l.b16 %v497
      %v537 = vunpack.c.l.b16 %v498
      %v538 = vunpack.c.l.b16 %v499
      %v539 = vunpack.c.l.b16 %v500
      %v540 = vunpack.c.l.b16 %v501
      %v541 = vunpack.c.l.b16 %v502
      %v542 = vunpack.c.l.b16 %v503
      %v543 = vunpack.c.l.b16 %v504
      %v544 = vunpack.c.l.b16 %v505
      %v545 = vunpack.c.l.b16 %v506
      %v546 = vunpack.c.l.b16 %v507
      %v547 = vunpack.c.l.b16 %v508
      %v548 = vunpack.c.l.b16 %v509
      %v549 = vunpack.c.l.b16 %v510
      %v550 = vunpack.c.l.b16 %v511
      %v551 = vunpack.c.l.b16 %v512
      %v552 = vpack.c.b16 %v537, %v536
      %v553 = vpack.c.b16 %v539, %v538
      %v554 = vpack.c.b16 %v541, %v540
      %v555 = vpack.c.b16 %v543, %v542
      %v556 = vpack.c.b16 %v545, %v544
      %v557 = vpack.c.b16 %v547, %v546
      %v558 = vpack.c.b16 %v549, %v548
      %v559 = vpack.c.b16 %v551, %v550
      %568 = vmatprep.subr.bf16.mxu0 0
      %569 = vmatpush1.bf16.msra.mxu0 %v552
      %570 = vmatprep.subr.bf16.mxu0 0
      %571 = vmatpush1.bf16.msra.mxu0 %v553
      %572 = vmatprep.subr.bf16.mxu0 0
      %573 = vmatpush1.bf16.msra.mxu0 %v554
      %574 = vmatprep.subr.bf16.mxu0 0
      %575 = vmatpush1.bf16.msra.mxu0 %v555
      %576 = vmatprep.subr.bf16.mxu0 0
      %577 = vmatpush1.bf16.msra.mxu0 %v556
      %578 = vmatprep.subr.bf16.mxu0 0
      %579 = vmatpush1.bf16.msra.mxu0 %v557
      %580 = vmatprep.subr.bf16.mxu0 0
      %581 = vmatpush1.bf16.msra.mxu0 %v558
      %582 = vmatprep.subr.bf16.mxu0 0
      %583 = vmatpush1.bf16.msra.mxu0 %v559
      %584 = vmatprep.subr.bf16.mxu0 0
      %585 = vmatpush1.bf16.msra.mxu0 0
      %586 = vmatprep.subr.bf16.mxu0 0
      %587 = vmatpush1.bf16.msra.mxu0 0
      %588 = vmatprep.subr.bf16.mxu0 0
      %589 = vmatpush1.bf16.msra.mxu0 0
      %590 = vmatprep.subr.bf16.mxu0 0
      %591 = vmatpush1.bf16.msra.mxu0 0
      %592 = vmatprep.subr.bf16.mxu0 0
      %593 = vmatpush1.bf16.msra.mxu0 0
      %594 = vmatprep.subr.bf16.mxu0 0
      %595 = vmatpush1.bf16.msra.mxu0 0
      %596 = vmatprep.subr.bf16.mxu0 0
      %597 = vmatpush1.bf16.msra.mxu0 0
      %598 = vmatprep.subr.bf16.mxu0 0
      %599 = vmatpush1.bf16.msra.mxu0 0
      %600 = vmatprep.mubr.bf16.mxu0 0
      %601 = vmatmul.mubr.bf16.gmra.mrb[0].mxu0 %v490
      %v602 = vpop.f32.mrb[0].mxu0
      %v603 = vadd.f32 %v518, %v602
      %v604 = vpop.f32.mrb[0].mxu0
      %v605 = vpop.f32.mrb[0].mxu0
      %v606 = vadd.f32 %v518, %v605
      %v607 = vpop.f32.mrb[0].mxu0
      %608 = vmatprep.mubr.bf16.mxu0 0
      %609 = vmatmul.mubr.bf16.gmra.mrb[0].mxu0 %v491
      %v610 = vpop.f32.mrb[0].mxu0
      %v611 = vadd.f32 %v518, %v610
      %v612 = vpop.f32.mrb[0].mxu0
      %v613 = vpop.f32.mrb[0].mxu0
      %v614 = vadd.f32 %v518, %v613
      %v615 = vpop.f32.mrb[0].mxu0
      %616 = vmatprep.mubr.bf16.mxu0 0
      %617 = vmatmul.mubr.bf16.gmra.mrb[0].mxu0 %v492
      %v618 = vpop.f32.mrb[0].mxu0
      %v619 = vadd.f32 %v518, %v618
      %v620 = vpop.f32.mrb[0].mxu0
      %v621 = vpop.f32.mrb[0].mxu0
      %v622 = vadd.f32 %v518, %v621
      %v623 = vpop.f32.mrb[0].mxu0
      %624 = vmatprep.mubr.bf16.mxu0 0
      %625 = vmatmul.mubr.bf16.gmra.mrb[0].mxu0 %v493
      %v626 = vpop.f32.mrb[0].mxu0
      %v627 = vadd.f32 %v518, %v626
      %v628 = vpop.f32.mrb[0].mxu0
      %v629 = vpop.f32.mrb[0].mxu0
      %v630 = vadd.f32 %v518, %v629
      %v631 = vpop.f32.mrb[0].mxu0
      %632 = vmatprep.mubr.bf16.mxu0 0
      %633 = vmatmul.mubr.bf16.gmra.mrb[0].mxu0 %v494
      %v634 = vpop.f32.mrb[0].mxu0
      %v635 = vadd.f32 %v518, %v634
      %v636 = vpop.f32.mrb[0].mxu0
      %v637 = vpop.f32.mrb[0].mxu0
      %v638 = vadd.f32 %v518, %v637
      %v639 = vpop.f32.mrb[0].mxu0
      %640 = vmatprep.mubr.bf16.mxu0 0
      %641 = vmatmul.mubr.bf16.gmra.mrb[0].mxu0 %v495
      %v642 = vpop.f32.mrb[0].mxu0
      %v643 = vadd.f32 %v518, %v642
      %v644 = vpop.f32.mrb[0].mxu0
      %v645 = vpop.f32.mrb[0].mxu0
      %v646 = vadd.f32 %v518, %v645
      %v647 = vpop.f32.mrb[0].mxu0
      %648 = vmatprep.mubr.bf16.mxu0 0
      %649 = vmatmul.mubr.bf16.gmra.mrb[0].mxu0 %v496
      %v650 = vpop.f32.mrb[0].mxu0
      %v651 = vadd.f32 %v518, %v650
      %v652 = vpop.f32.mrb[0].mxu0
      %v653 = vpop.f32.mrb[0].mxu0
      %v654 = vpop.f32.mrb[0].mxu0
      %655 = vdwg.mxu0
      %v656 = vmax.f32 %v603, 0.0
      %v657 = vmax.f32 %v606, 0.0
      %v658 = vmax.f32 %v611, 0.0
      %v659 = vmax.f32 %v614, 0.0
      %v660 = vmax.f32 %v619, 0.0
      %v661 = vmax.f32 %v622, 0.0
      %v662 = vmax.f32 %v627, 0.0
      %v663 = vmax.f32 %v630, 0.0
      %v664 = vmax.f32 %v635, 0.0
      %v665 = vmax.f32 %v638, 0.0
      %v666 = vmax.f32 %v643, 0.0
      %v667 = vmax.f32 %v646, 0.0
      %v668 = vmax.f32 %v651, 0.0
      %v669 = vpack.c.bf16 %v657, %v656
      %v670 = vpack.c.bf16 %v659, %v658
      %v671 = vpack.c.bf16 %v661, %v660
      %v672 = vpack.c.bf16 %v663, %v662
      %v673 = vpack.c.bf16 %v665, %v664
      %v674 = vpack.c.bf16 %v667, %v666
      %v675 = vpack.c.bf16 %v668, %v668
      %v676 = vld [vmem:[%s5] sm:$0xf]
      %v677 = vld [vmem:[%s5 + $0x4] sm:$0xf]
      %v678 = vld [vmem:[%s5 + $0x8] sm:$0xf]
      %v679 = vld [vmem:[%s5 + $0xc] sm:$0xf]
      %v680 = vld [vmem:[%s5 + $0x10] sm:$0xf]
      %v681 = vld [vmem:[%s5 + $0x14] sm:$0xf]
      %v682 = vld [vmem:[%s5 + $0x18] sm:$0xf]
      %v683 = vld [vmem:[%s5 + $0x1c] sm:$0xf]
      %v684 = vld [vmem:[%s5 + $0x20] sm:$0xf]
      %v685 = vld [vmem:[%s5 + $0x24] sm:$0xf]
      %v686 = vld [vmem:[%s5 + $0x28] sm:$0xf]
      %v687 = vld [vmem:[%s5 + $0x2c] sm:$0xf]
      %v688 = vld [vmem:[%s5 + $0x30] sm:$0xf]
      %v689 = vld [vmem:[%s5 + $0x34] sm:$0xf]
      %v690 = vld [vmem:[%s5 + $0x38] sm:$0xf]
      %v691 = vld [vmem:[%s5 + $0x3c] sm:$0xf]
      %v692 = vld [vmem:[%s6] sm:$0x1]
      %v694 = vlaneseq
      %v695 = vshrl.u32 %v694, 7
      %v696 = vsub.s32 0, %v695
      %v697 = vrot.slane %v692, %v696
      %v715 = vunpack.c.l.b16 %v676
      %v716 = vunpack.c.l.b16 %v677
      %v717 = vunpack.c.l.b16 %v678
      %v718 = vunpack.c.l.b16 %v679
      %v719 = vunpack.c.l.b16 %v680
      %v720 = vunpack.c.l.b16 %v681
      %v721 = vunpack.c.l.b16 %v682
      %v722 = vunpack.c.l.b16 %v683
      %v723 = vunpack.c.l.b16 %v684
      %v724 = vunpack.c.l.b16 %v685
      %v725 = vunpack.c.l.b16 %v686
      %v726 = vunpack.c.l.b16 %v687
      %v727 = vunpack.c.l.b16 %v688
      %v728 = vunpack.c.l.b16 %v689
      %v729 = vunpack.c.l.b16 %v690
      %v730 = vunpack.c.l.b16 %v691
      %v731 = vpack.c.b16 %v716, %v715
      %v732 = vpack.c.b16 %v718, %v717
      %v733 = vpack.c.b16 %v720, %v719
      %v734 = vpack.c.b16 %v722, %v721
      %v735 = vpack.c.b16 %v724, %v723
      %v736 = vpack.c.b16 %v726, %v725
      %v737 = vpack.c.b16 %v728, %v727
      %v738 = vpack.c.b16 %v730, %v729
      %747 = vmatprep.subr.bf16.mxu0 0
      %748 = vmatpush1.bf16.msra.mxu0 %v731
      %749 = vmatprep.subr.bf16.mxu0 0
      %750 = vmatpush1.bf16.msra.mxu0 %v732
      %751 = vmatprep.subr.bf16.mxu0 0
      %752 = vmatpush1.bf16.msra.mxu0 %v733
      %753 = vmatprep.subr.bf16.mxu0 0
      %754 = vmatpush1.bf16.msra.mxu0 %v734
      %755 = vmatprep.subr.bf16.mxu0 0
      %756 = vmatpush1.bf16.msra.mxu0 %v735
      %757 = vmatprep.subr.bf16.mxu0 0
      %758 = vmatpush1.bf16.msra.mxu0 %v736
      %759 = vmatprep.subr.bf16.mxu0 0
      %760 = vmatpush1.bf16.msra.mxu0 %v737
      %761 = vmatprep.subr.bf16.mxu0 0
      %762 = vmatpush1.bf16.msra.mxu0 %v738
      %763 = vmatprep.subr.bf16.mxu0 0
      %764 = vmatpush1.bf16.msra.mxu0 0
      %765 = vmatprep.subr.bf16.mxu0 0
      %766 = vmatpush1.bf16.msra.mxu0 0
      %767 = vmatprep.subr.bf16.mxu0 0
      %768 = vmatpush1.bf16.msra.mxu0 0
      %769 = vmatprep.subr.bf16.mxu0 0
      %770 = vmatpush1.bf16.msra.mxu0 0
      %771 = vmatprep.subr.bf16.mxu0 0
      %772 = vmatpush1.bf16.msra.mxu0 0
      %773 = vmatprep.subr.bf16.mxu0 0
      %774 = vmatpush1.bf16.msra.mxu0 0
      %775 = vmatprep.subr.bf16.mxu0 0
      %776 = vmatpush1.bf16.msra.mxu0 0
      %777 = vmatprep.subr.bf16.mxu0 0
      %778 = vmatpush1.bf16.msra.mxu0 0
      %779 = vmatprep.mubr.bf16.mxu0 0
      %780 = vmatmul.mubr.bf16.gmra.mrb[0].mxu0 %v669
      %v781 = vpop.f32.mrb[0].mxu0
      %v782 = vadd.f32 %v697, %v781
      %v783 = vpop.f32.mrb[0].mxu0
      %v784 = vpop.f32.mrb[0].mxu0
      %v785 = vadd.f32 %v697, %v784
      %v786 = vpop.f32.mrb[0].mxu0
      %787 = vmatprep.mubr.bf16.mxu0 0
      %788 = vmatmul.mubr.bf16.gmra.mrb[0].mxu0 %v670
      %v789 = vpop.f32.mrb[0].mxu0
      %v790 = vadd.f32 %v697, %v789
      %v791 = vpop.f32.mrb[0].mxu0
      %v792 = vpop.f32.mrb[0].mxu0
      %v793 = vadd.f32 %v697, %v792
      %v794 = vpop.f32.mrb[0].mxu0
      %795 = vmatprep.mubr.bf16.mxu0 0
      %796 = vmatmul.mubr.bf16.gmra.mrb[0].mxu0 %v671
      %v797 = vpop.f32.mrb[0].mxu0
      %v798 = vadd.f32 %v697, %v797
      %v799 = vpop.f32.mrb[0].mxu0
      %v800 = vpop.f32.mrb[0].mxu0
      %v801 = vadd.f32 %v697, %v800
      %v802 = vpop.f32.mrb[0].mxu0
      %803 = vmatprep.mubr.bf16.mxu0 0
      %804 = vmatmul.mubr.bf16.gmra.mrb[0].mxu0 %v672
      %v805 = vpop.f32.mrb[0].mxu0
      %v806 = vadd.f32 %v697, %v805
      %v807 = vpop.f32.mrb[0].mxu0
      %v808 = vpop.f32.mrb[0].mxu0
      %v809 = vadd.f32 %v697, %v808
      %v810 = vpop.f32.mrb[0].mxu0
      %811 = vmatprep.mubr.bf16.mxu0 0
      %812 = vmatmul.mubr.bf16.gmra.mrb[0].mxu0 %v673
      %v813 = vpop.f32.mrb[0].mxu0
      %v814 = vadd.f32 %v697, %v813
      %v815 = vpop.f32.mrb[0].mxu0
      %v816 = vpop.f32.mrb[0].mxu0
      %v817 = vadd.f32 %v697, %v816
      %v818 = vpop.f32.mrb[0].mxu0
      %819 = vmatprep.mubr.bf16.mxu0 0
      %820 = vmatmul.mubr.bf16.gmra.mrb[0].mxu0 %v674
      %v821 = vpop.f32.mrb[0].mxu0
      %v822 = vadd.f32 %v697, %v821
      %v823 = vpop.f32.mrb[0].mxu0
      %v824 = vpop.f32.mrb[0].mxu0
      %v825 = vadd.f32 %v697, %v824
      %v826 = vpop.f32.mrb[0].mxu0
      %827 = vmatprep.mubr.bf16.mxu0 0
      %828 = vmatmul.mubr.bf16.gmra.mrb[0].mxu0 %v675
      %v829 = vpop.f32.mrb[0].mxu0
      %v830 = vadd.f32 %v697, %v829
      %v831 = vpop.f32.mrb[0].mxu0
      %v832 = vpop.f32.mrb[0].mxu0
      %v833 = vpop.f32.mrb[0].mxu0
      %834 = vdwg.mxu0
      %vm835 = vcmask 31744
      %836 = vst.msk [vmem:[%s315] sm:$0xff] %vm835, %v782
      %837 = vst.msk [vmem:[%s315 + $0x8] sm:$0xff] %vm835, %v785
      %838 = vst.msk [vmem:[%s315 + $0x10] sm:$0xff] %vm835, %v790
      %839 = vst.msk [vmem:[%s315 + $0x18] sm:$0xff] %vm835, %v793
      %840 = vst.msk [vmem:[%s315 + $0x20] sm:$0xff] %vm835, %v798
      %841 = vst.msk [vmem:[%s315 + $0x28] sm:$0xff] %vm835, %v801
      %842 = vst.msk [vmem:[%s315 + $0x30] sm:$0xff] %vm835, %v806
      %843 = vst.msk [vmem:[%s315 + $0x38] sm:$0xff] %vm835, %v809
      %844 = vst.msk [vmem:[%s315 + $0x40] sm:$0xff] %vm835, %v814
      %845 = vst.msk [vmem:[%s315 + $0x48] sm:$0xff] %vm835, %v817
      %846 = vst.msk [vmem:[%s315 + $0x50] sm:$0xff] %vm835, %v822
      %847 = vst.msk [vmem:[%s315 + $0x58] sm:$0xff] %vm835, %v825
      %848 = vst.msk [vmem:[%s315 + $0x60] sm:$0xff] %vm835, %v830
      %v849 = vlaneseq
      %v850 = vand.u32 %v849, 127
      %vm851 = vcmp.lt.s32.totalorder %v850, 4
      %v852 = vsel %vm851, %v782, -inf
      %v853 = vsel %vm851, %v785, -inf
      %v854 = vsel %vm851, %v790, -inf
      %v855 = vsel %vm851, %v793, -inf
      %v856 = vsel %vm851, %v798, -inf
      %v857 = vsel %vm851, %v801, -inf
      %v858 = vsel %vm851, %v806, -inf
      %v859 = vsel %vm851, %v809, -inf
      %v860 = vsel %vm851, %v814, -inf
      %v861 = vsel %vm851, %v817, -inf
      %v862 = vsel %vm851, %v822, -inf
      %v863 = vsel %vm851, %v825, -inf
      %v864 = vsel %vm851, %v830, -inf
      %865 = vmax.xlane.f32.xlu0 %v852
      %v866 = vpop.xlane.xlu0 %865
      %867 = vmax.xlane.f32.xlu0 %v853
      %v868 = vpop.xlane.xlu0 %867
      %869 = vmax.xlane.f32.xlu0 %v854
      %v870 = vpop.xlane.xlu0 %869
      %871 = vmax.xlane.f32.xlu0 %v855
      %v872 = vpop.xlane.xlu0 %871
      %873 = vmax.xlane.f32.xlu0 %v856
      %v874 = vpop.xlane.xlu0 %873
      %875 = vmax.xlane.f32.xlu0 %v857
      %v876 = vpop.xlane.xlu0 %875
      %877 = vmax.xlane.f32.xlu0 %v858
      %v878 = vpop.xlane.xlu0 %877
      %879 = vmax.xlane.f32.xlu0 %v859
      %v880 = vpop.xlane.xlu0 %879
      %881 = vmax.xlane.f32.xlu0 %v860
      %v882 = vpop.xlane.xlu0 %881
      %883 = vmax.xlane.f32.xlu0 %v861
      %v884 = vpop.xlane.xlu0 %883
      %885 = vmax.xlane.f32.xlu0 %v862
      %v886 = vpop.xlane.xlu0 %885
      %887 = vmax.xlane.f32.xlu0 %v863
      %v888 = vpop.xlane.xlu0 %887
      %889 = vmax.xlane.f32.xlu0 %v864
      %v890 = vpop.xlane.xlu0 %889
      %vm891 = vcmp.eq.f32.partialorder %v852, %v866
      %vm892 = vcmp.eq.f32.partialorder %v853, %v868
      %vm893 = vcmp.eq.f32.partialorder %v854, %v870
      %vm894 = vcmp.eq.f32.partialorder %v855, %v872
      %vm895 = vcmp.eq.f32.partialorder %v856, %v874
      %vm896 = vcmp.eq.f32.partialorder %v857, %v876
      %vm897 = vcmp.eq.f32.partialorder %v858, %v878
      %vm898 = vcmp.eq.f32.partialorder %v859, %v880
      %vm899 = vcmp.eq.f32.partialorder %v860, %v882
      %vm900 = vcmp.eq.f32.partialorder %v861, %v884
      %vm901 = vcmp.eq.f32.partialorder %v862, %v886
      %vm902 = vcmp.eq.f32.partialorder %v863, %v888
      %vm903 = vcmp.eq.f32.partialorder %v864, %v890
      %vm904 = vmand %vm891, %vm851
      %vm905 = vmand %vm892, %vm851
      %vm906 = vmand %vm893, %vm851
      %vm907 = vmand %vm894, %vm851
      %vm908 = vmand %vm895, %vm851
      %vm909 = vmand %vm896, %vm851
      %vm910 = vmand %vm897, %vm851
      %vm911 = vmand %vm898, %vm851
      %vm912 = vmand %vm899, %vm851
      %vm913 = vmand %vm900, %vm851
      %vm914 = vmand %vm901, %vm851
      %vm915 = vmand %vm902, %vm851
      %vm916 = vmand %vm903, %vm851
      %v917 = vsel %vm904, %v850, 128
      %v918 = vsel %vm905, %v850, 128
      %v919 = vsel %vm906, %v850, 128
      %v920 = vsel %vm907, %v850, 128
      %v921 = vsel %vm908, %v850, 128
      %v922 = vsel %vm909, %v850, 128
      %v923 = vsel %vm910, %v850, 128
      %v924 = vsel %vm911, %v850, 128
      %v925 = vsel %vm912, %v850, 128
      %v926 = vsel %vm913, %v850, 128
      %v927 = vsel %vm914, %v850, 128
      %v928 = vsel %vm915, %v850, 128
      %v929 = vsel %vm916, %v850, 128
      %v930 = vand.u32 %v917, 65535
      %v931 = vshra.s32 %v917, 16
      %v932 = vcvt.s32.f32 %v930
      %v933 = vcvt.s32.f32 %v931
      %934 = vmin.xlane.f32.xlu0 %v933
      %v935 = vpop.xlane.xlu0 %934
      %vm936 = vcmp.eq.f32.partialorder %v933, %v935
      %v937 = vsel %vm936, %v932, inf
      %938 = vmin.xlane.f32.xlu0 %v937
      %v939 = vpop.xlane.xlu0 %938
      %v940 = vcvt.f32.s32 %v939
      %v941 = vcvt.f32.s32 %v935
      %v942 = vshll.u32 %v941, 16
      %v943 = vadd.s32 %v942, %v940
      %v944 = vand.u32 %v918, 65535
      %v945 = vshra.s32 %v918, 16
      %v946 = vcvt.s32.f32 %v944
      %v947 = vcvt.s32.f32 %v945
      %948 = vmin.xlane.f32.xlu0 %v947
      %v949 = vpop.xlane.xlu0 %948
      %vm950 = vcmp.eq.f32.partialorder %v947, %v949
      %v951 = vsel %vm950, %v946, inf
      %952 = vmin.xlane.f32.xlu0 %v951
      %v953 = vpop.xlane.xlu0 %952
      %v954 = vcvt.f32.s32 %v953
      %v955 = vcvt.f32.s32 %v949
      %v956 = vshll.u32 %v955, 16
      %v957 = vadd.s32 %v956, %v954
      %v958 = vand.u32 %v919, 65535
      %v959 = vshra.s32 %v919, 16
      %v960 = vcvt.s32.f32 %v958
      %v961 = vcvt.s32.f32 %v959
      %962 = vmin.xlane.f32.xlu0 %v961
      %v963 = vpop.xlane.xlu0 %962
      %vm964 = vcmp.eq.f32.partialorder %v961, %v963
      %v965 = vsel %vm964, %v960, inf
      %966 = vmin.xlane.f32.xlu0 %v965
      %v967 = vpop.xlane.xlu0 %966
      %v968 = vcvt.f32.s32 %v967
      %v969 = vcvt.f32.s32 %v963
      %v970 = vshll.u32 %v969, 16
      %v971 = vadd.s32 %v970, %v968
      %v972 = vand.u32 %v920, 65535
      %v973 = vshra.s32 %v920, 16
      %v974 = vcvt.s32.f32 %v972
      %v975 = vcvt.s32.f32 %v973
      %976 = vmin.xlane.f32.xlu0 %v975
      %v977 = vpop.xlane.xlu0 %976
      %vm978 = vcmp.eq.f32.partialorder %v975, %v977
      %v979 = vsel %vm978, %v974, inf
      %980 = vmin.xlane.f32.xlu0 %v979
      %v981 = vpop.xlane.xlu0 %980
      %v982 = vcvt.f32.s32 %v981
      %v983 = vcvt.f32.s32 %v977
      %v984 = vshll.u32 %v983, 16
      %v985 = vadd.s32 %v984, %v982
      %v986 = vand.u32 %v921, 65535
      %v987 = vshra.s32 %v921, 16
      %v988 = vcvt.s32.f32 %v986
      %v989 = vcvt.s32.f32 %v987
      %990 = vmin.xlane.f32.xlu0 %v989
      %v991 = vpop.xlane.xlu0 %990
      %vm992 = vcmp.eq.f32.partialorder %v989, %v991
      %v993 = vsel %vm992, %v988, inf
      %994 = vmin.xlane.f32.xlu0 %v993
      %v995 = vpop.xlane.xlu0 %994
      %v996 = vcvt.f32.s32 %v995
      %v997 = vcvt.f32.s32 %v991
      %v998 = vshll.u32 %v997, 16
      %v999 = vadd.s32 %v998, %v996
      %v1000 = vand.u32 %v922, 65535
      %v1001 = vshra.s32 %v922, 16
      %v1002 = vcvt.s32.f32 %v1000
      %v1003 = vcvt.s32.f32 %v1001
      %1004 = vmin.xlane.f32.xlu0 %v1003
      %v1005 = vpop.xlane.xlu0 %1004
      %vm1006 = vcmp.eq.f32.partialorder %v1003, %v1005
      %v1007 = vsel %vm1006, %v1002, inf
      %1008 = vmin.xlane.f32.xlu0 %v1007
      %v1009 = vpop.xlane.xlu0 %1008
      %v1010 = vcvt.f32.s32 %v1009
      %v1011 = vcvt.f32.s32 %v1005
      %v1012 = vshll.u32 %v1011, 16
      %v1013 = vadd.s32 %v1012, %v1010
      %v1014 = vand.u32 %v923, 65535
      %v1015 = vshra.s32 %v923, 16
      %v1016 = vcvt.s32.f32 %v1014
      %v1017 = vcvt.s32.f32 %v1015
      %1018 = vmin.xlane.f32.xlu0 %v1017
      %v1019 = vpop.xlane.xlu0 %1018
      %vm1020 = vcmp.eq.f32.partialorder %v1017, %v1019
      %v1021 = vsel %vm1020, %v1016, inf
      %1022 = vmin.xlane.f32.xlu0 %v1021
      %v1023 = vpop.xlane.xlu0 %1022
      %v1024 = vcvt.f32.s32 %v1023
      %v1025 = vcvt.f32.s32 %v1019
      %v1026 = vshll.u32 %v1025, 16
      %v1027 = vadd.s32 %v1026, %v1024
      %v1028 = vand.u32 %v924, 65535
      %v1029 = vshra.s32 %v924, 16
      %v1030 = vcvt.s32.f32 %v1028
      %v1031 = vcvt.s32.f32 %v1029
      %1032 = vmin.xlane.f32.xlu0 %v1031
      %v1033 = vpop.xlane.xlu0 %1032
      %vm1034 = vcmp.eq.f32.partialorder %v1031, %v1033
      %v1035 = vsel %vm1034, %v1030, inf
      %1036 = vmin.xlane.f32.xlu0 %v1035
      %v1037 = vpop.xlane.xlu0 %1036
      %v1038 = vcvt.f32.s32 %v1037
      %v1039 = vcvt.f32.s32 %v1033
      %v1040 = vshll.u32 %v1039, 16
      %v1041 = vadd.s32 %v1040, %v1038
      %v1042 = vand.u32 %v925, 65535
      %v1043 = vshra.s32 %v925, 16
      %v1044 = vcvt.s32.f32 %v1042
      %v1045 = vcvt.s32.f32 %v1043
      %1046 = vmin.xlane.f32.xlu0 %v1045
      %v1047 = vpop.xlane.xlu0 %1046
      %vm1048 = vcmp.eq.f32.partialorder %v1045, %v1047
      %v1049 = vsel %vm1048, %v1044, inf
      %1050 = vmin.xlane.f32.xlu0 %v1049
      %v1051 = vpop.xlane.xlu0 %1050
      %v1052 = vcvt.f32.s32 %v1051
      %v1053 = vcvt.f32.s32 %v1047
      %v1054 = vshll.u32 %v1053, 16
      %v1055 = vadd.s32 %v1054, %v1052
      %v1056 = vand.u32 %v926, 65535
      %v1057 = vshra.s32 %v926, 16
      %v1058 = vcvt.s32.f32 %v1056
      %v1059 = vcvt.s32.f32 %v1057
      %1060 = vmin.xlane.f32.xlu0 %v1059
      %v1061 = vpop.xlane.xlu0 %1060
      %vm1062 = vcmp.eq.f32.partialorder %v1059, %v1061
      %v1063 = vsel %vm1062, %v1058, inf
      %1064 = vmin.xlane.f32.xlu0 %v1063
      %v1065 = vpop.xlane.xlu0 %1064
      %v1066 = vcvt.f32.s32 %v1065
      %v1067 = vcvt.f32.s32 %v1061
      %v1068 = vshll.u32 %v1067, 16
      %v1069 = vadd.s32 %v1068, %v1066
      %v1070 = vand.u32 %v927, 65535
      %v1071 = vshra.s32 %v927, 16
      %v1072 = vcvt.s32.f32 %v1070
      %v1073 = vcvt.s32.f32 %v1071
      %1074 = vmin.xlane.f32.xlu0 %v1073
      %v1075 = vpop.xlane.xlu0 %1074
      %vm1076 = vcmp.eq.f32.partialorder %v1073, %v1075
      %v1077 = vsel %vm1076, %v1072, inf
      %1078 = vmin.xlane.f32.xlu0 %v1077
      %v1079 = vpop.xlane.xlu0 %1078
      %v1080 = vcvt.f32.s32 %v1079
      %v1081 = vcvt.f32.s32 %v1075
      %v1082 = vshll.u32 %v1081, 16
      %v1083 = vadd.s32 %v1082, %v1080
      %v1084 = vand.u32 %v928, 65535
      %v1085 = vshra.s32 %v928, 16
      %v1086 = vcvt.s32.f32 %v1084
      %v1087 = vcvt.s32.f32 %v1085
      %1088 = vmin.xlane.f32.xlu0 %v1087
      %v1089 = vpop.xlane.xlu0 %1088
      %vm1090 = vcmp.eq.f32.partialorder %v1087, %v1089
      %v1091 = vsel %vm1090, %v1086, inf
      %1092 = vmin.xlane.f32.xlu0 %v1091
      %v1093 = vpop.xlane.xlu0 %1092
      %v1094 = vcvt.f32.s32 %v1093
      %v1095 = vcvt.f32.s32 %v1089
      %v1096 = vshll.u32 %v1095, 16
      %v1097 = vadd.s32 %v1096, %v1094
      %v1098 = vand.u32 %v929, 65535
      %v1099 = vshra.s32 %v929, 16
      %v1100 = vcvt.s32.f32 %v1098
      %v1101 = vcvt.s32.f32 %v1099
      %1102 = vmin.xlane.f32.xlu0 %v1101
      %v1103 = vpop.xlane.xlu0 %1102
      %vm1104 = vcmp.eq.f32.partialorder %v1101, %v1103
      %v1105 = vsel %vm1104, %v1100, inf
      %1106 = vmin.xlane.f32.xlu0 %v1105
      %v1107 = vpop.xlane.xlu0 %1106
      %v1108 = vcvt.f32.s32 %v1107
      %v1109 = vcvt.f32.s32 %v1103
      %v1110 = vshll.u32 %v1109, 16
      %v1111 = vadd.s32 %v1110, %v1108
      %vm1112 = vcmask 7168
      %1113 = vst.msk [vmem:[%s321] sm:$0xff] %vm1112, %v943
      %1114 = vst.msk [vmem:[%s321 + $0x8] sm:$0xff] %vm1112, %v957
      %1115 = vst.msk [vmem:[%s321 + $0x10] sm:$0xff] %vm1112, %v971
      %1116 = vst.msk [vmem:[%s321 + $0x18] sm:$0xff] %vm1112, %v985
      %1117 = vst.msk [vmem:[%s321 + $0x20] sm:$0xff] %vm1112, %v999
      %1118 = vst.msk [vmem:[%s321 + $0x28] sm:$0xff] %vm1112, %v1013
      %1119 = vst.msk [vmem:[%s321 + $0x30] sm:$0xff] %vm1112, %v1027
      %1120 = vst.msk [vmem:[%s321 + $0x38] sm:$0xff] %vm1112, %v1041
      %1121 = vst.msk [vmem:[%s321 + $0x40] sm:$0xff] %vm1112, %v1055
      %1122 = vst.msk [vmem:[%s321 + $0x48] sm:$0xff] %vm1112, %v1069
      %1123 = vst.msk [vmem:[%s321 + $0x50] sm:$0xff] %vm1112, %v1083
      %1124 = vst.msk [vmem:[%s321 + $0x58] sm:$0xff] %vm1112, %v1097
      %1125 = vst.msk [vmem:[%s321 + $0x60] sm:$0xff] %vm1112, %v1111
      %s1126 = smul.u32 13, %s20
      %p1127 = scmp.lt.s32.totalorder %s1126, 25
      %s1128 = scalar_select %p1127, %s1126, 25
      %s1129 = smul.addr %s1128, 8
      %s1130 = scalar_lea.vmem %s7, %s1129
      %s1131 = smul.u32 13, %s20
      %p1132 = scmp.lt.s32.totalorder %s1131, 25
      %s1133 = scalar_select %p1132, %s1131, 25
      %s1134 = smul.addr %s1133, 8
      %s1135 = scalar_lea.vmem %s8, %s1134
      // Predicated region
      $region49: #{deepq_forward.1} parent=47 // pred_check
        %p1136 = pneg %p190
      $region50: #{deepq_forward.1} parent=47 // pred_check_branch
        %1138 = sbr.rel (%p1136) target = $region52
      $region51: #{deepq_forward.1} parent=47 // pred_region
        %s1139 = smul.u32 13, %s20
      $region52: #{deepq_forward.1} parent=47 // pred_fallthru
        _
      // Predicated region
      $region53: #{deepq_forward.1} parent=47 // pred_check
        %p1140 = pneg %p216
      $region54: #{deepq_forward.1} parent=47 // pred_check_branch
        %1142 = sbr.rel (%p1140) target = $region56
      $region55: #{deepq_forward.1} parent=47 // pred_region
        %s1143 = smul.u32 13, %s20
      $region56: #{deepq_forward.1} parent=47 // pred_fallthru
        _
    $region48: #{deepq_forward.1} parent=5 // pred_fallthru
      _
    %p1144 = scmp.le.s32.totalorder 2, %s15
    // Predicated region
    $region57: #{deepq_forward.1} parent=5 // pred_check
      %p1145 = pneg %p1144
    $region58: #{deepq_forward.1} parent=5 // pred_check_branch
      %1147 = sbr.rel (%p1145) target = $region60
    $region59: #{deepq_forward.1} parent=5 // pred_region
      %s1148 = ssub.s32 %s15, 2
      // Predicated region
      $region61: #{deepq_forward.1} parent=59 // pred_check
        %p1149 = pneg %p196
      $region62: #{deepq_forward.1} parent=59 // pred_check_branch
        %1151 = sbr.rel (%p1149) target = $region64
      $region63: #{deepq_forward.1} parent=59 // pred_region
        %s1152 = smul.u32 13, %s21
        %p1153 = scmp.lt.s32.totalorder %s1152, 25
        %s1154 = scalar_select %p1153, %s1152, 25
        %s1155 = smul.addr %s1154, 8
        %s1156 = scalar_lea.vmem %s7, %s1155
      $region64: #{deepq_forward.1} parent=59 // pred_fallthru
        _
      // Predicated region
      $region65: #{deepq_forward.1} parent=59 // pred_check
        %p1157 = pneg %p222
      $region66: #{deepq_forward.1} parent=59 // pred_check_branch
        %1159 = sbr.rel (%p1157) target = $region68
      $region67: #{deepq_forward.1} parent=59 // pred_region
        %s1160 = smul.u32 13, %s21
        %p1161 = scmp.lt.s32.totalorder %s1160, 25
        %s1162 = scalar_select %p1161, %s1160, 25
        %s1163 = smul.addr %s1162, 8
        %s1164 = scalar_lea.vmem %s8, %s1163
      $region68: #{deepq_forward.1} parent=59 // pred_fallthru
        _
    $region60: #{deepq_forward.1} parent=5 // pred_fallthru
      _
  $region6: #{deepq_forward.1} parent=0 // loop_footer
    %s19 = sadd.s32 1, %s15
  $region7: #{deepq_forward.1} parent=0 // loop_footer_branch
    %14 = sbr.rel target = $region3
  $region8: #{deepq_forward.1} parent=0 // loop_exit
    _

</llo_original>
